<compile_context>
chip_gen: v5e
topology: v5e:2x2
jax: 0.10.0
libtpu: 0.0.40
codegen_flags: <defaults>
</compile_context>

<pallas_src>
import jax
import jax.numpy as jnp
from jax import lax
from jax.experimental import pallas as pl
from jax.experimental.pallas import tpu as pltpu


def _round_up(a, b):
    return (a + b - 1) // b * b


def _vmem_capacity_bytes():
    """Trace-time VMEM query with a conservative fallback (v7x per-TC)."""
    try:
        info = pltpu.get_tpu_info()
        cap = getattr(info, "vmem_capacity_bytes", None)
        if cap:
            return int(cap)
    except Exception:
        pass
    return 64 * 1024 * 1024


def _tile_targets(vmem_cap):
    """Generation-tuned (tm, tn, tk) targets (clamped to the problem later)."""
    if vmem_cap >= (96 << 20):
        # v5e / v6e: 128 MiB VMEM. AI = 1536*1536/(1536+1536) = 768 FLOP/byte,
        # above both ridges; ~36 MiB of double-buffered tiles.
        return 1536, 1536, 1024
    # v7x: 64 MiB VMEM per TensorCore. 1024x2048 -> AI ~ 683 FLOP/byte,
    # ~28 MiB (f32 out) / ~20 MiB (bf16 out) of tiles.
    return 1024, 2048, 512


def _vmem_limit_bytes(tm, tn, tk, x_bytes, w_bytes, out_bytes, cap):
    need = (2 * tm * tk * x_bytes      # x double buffer
            + 2 * tk * tn * w_bytes    # weight double buffer
            + 2 * tm * tn * out_bytes  # out double buffer
            + tm * tn * 4)             # f32 accumulator scratch
    limit = max(need + (8 << 20), 32 << 20)
    return int(min(limit, int(cap * 0.9)))


# --------------------------------------------------------------------------
# Pallas kernel: tiled matmul, scale folded into the epilogue.
# --------------------------------------------------------------------------
def _qlinear_matmul_kernel(scale_ref, x_ref, w_ref, o_ref, acc_ref):
    # scale_ref: (1,)  f32 in SMEM        weight_scale
    # x_ref:     (tm, tk) compute dtype   activation tile
    # w_ref:     (tk, tn) int8/compute    quantized integer-level weights (K,N)
    # o_ref:     (tm, tn) out dtype
    # acc_ref:   (tm, tn) f32 VMEM scratch accumulator (resident across K)
    k = pl.program_id(2)

    # int8 weight levels are upcast to the activation dtype right before the
    # MXU; the VPU cast hides under the DMA in the bandwidth-bound regime.
    prod = jnp.dot(x_ref[...], w_ref[...].astype(x_ref.dtype),
                   preferred_element_type=jnp.float32)

    @pl.when(k == 0)
    def _first():
        acc_ref[...] = prod            # no zero-init + RMW on step 0

    @pl.when(k > 0)
    def _accumulate():
        acc_ref[...] += prod

    @pl.when(k == pl.num_programs(2) - 1)
    def _finalize():
        # dequant scale applied once per output element in the epilogue
        o_ref[...] = (acc_ref[...] * scale_ref[0]).astype(o_ref.dtype)


# --------------------------------------------------------------------------
# One-time weight_scale grid search (state-init path of the reference).
# --------------------------------------------------------------------------
def _grid_search_weight_scale(w, nbits_weight):
    nLevel = 2 ** (nbits_weight - 1) - 1
    gs_n = 10
    abs_w = jnp.abs(w)
    init_scale = jnp.max(abs_w) / nLevel
    # NOTE: jnp.quantile interpolates the median; torch.median takes the lower
    # middle element for even sizes. Difference is negligible except on exact
    # grid-search ties. One-time sort cost is accepted for layer init.
    end_scale = jnp.quantile(abs_w, 0.5) / nLevel
    gs_interval = (init_scale - end_scale) / (gs_n - 1)
    # torch.arange(init, end - 0.1*interval, -interval) -> exactly gs_n values
    scales = init_scale - gs_interval * jnp.arange(gs_n, dtype=w.dtype)
    # Guard: a zero candidate (median(|W|) == 0, pruned weights) would give
    # inf/NaN and corrupt the argmin; clamp the candidates, not just the result.
    safe_scales = jnp.maximum(scales, jnp.asarray(jnp.finfo(w.dtype).tiny, w.dtype))

    def l2_for(s):
        q = jnp.clip(jnp.round(w / s), -nLevel, nLevel)
        return jnp.sum((w - q * s) ** 2)

    # Sequential over the 10 candidates: scalar carry only, no (10,N,K) temps.
    l2 = lax.map(l2_for, safe_scales)
    index = jnp.argmin(l2)
    return init_scale - index.astype(w.dtype) * gs_interval


# --------------------------------------------------------------------------
# One-time (per layer) weight quantization + layout prep. Cache the result.
# --------------------------------------------------------------------------
def qlinear_prepare(weight, nbits_weight=8, *, compute_dtype=jnp.bfloat16,
                    tn=None, tk=None):
    """weight: (out_features, in_features) torch layout.

    Returns a dict holding the padded (K, N) integer-level weight, the scale,
    and the N/K tiling. Call once per layer; pass the result to qlinear_apply.
    """
    N, K = weight.shape
    vmem_cap = _vmem_capacity_bytes()
    tm_target, tn_target, tk_target = _tile_targets(vmem_cap)
    if tn is None:
        tn = min(tn_target, _round_up(N, 128))
    if tk is None:
        tk = min(tk_target, _round_up(K, 128))

    if nbits_weight is None:
        scale = jnp.float32(1.0)
        q = weight.astype(compute_dtype)
        store_dtype = compute_dtype
    else:
        assert nbits_weight >= 2, "bitwidth should be at least 2"
        nLevel = 2 ** (nbits_weight - 1) - 1
        w32 = weight.astype(jnp.float32)
        scale = _grid_search_weight_scale(w32, nbits_weight)
        # Guard against an all-zero weight (same hazard as the reference).
        scale = jnp.maximum(scale, jnp.finfo(jnp.float32).tiny).astype(jnp.float32)
        q = jnp.clip(jnp.round(w32 / scale), -nLevel, nLevel)   # one-time divide
        # Integer levels |q| <= 127 are exact in int8: store int8 in HBM and
        # upcast inside the kernel (halves weight bytes on every forward).
        store_dtype = jnp.int8 if nbits_weight <= 8 else compute_dtype
        q = q.astype(store_dtype)

    # TODO(synk): weight_variation (generate_variation) and training-mode EMA
    # of input_scale / STE gradients are not implemented; default eval-mode
    # module state is reproduced (forward only).

    # (out, in) -> (K, N): canonical MXU contraction, lane-dense output.
    # Pad once here, not per forward.
    Kp, Np = _round_up(K, tk), _round_up(N, tn)
    wq = jnp.zeros((Kp, Np), store_dtype).at[:K, :N].set(q.T)

    return dict(wq=wq,
                scale=jnp.reshape(scale, (1,)).astype(jnp.float32),
                n=N, k=K, tn=tn, tk=tk, tm_target=tm_target,
                compute_dtype=compute_dtype, vmem_cap=vmem_cap)


# --------------------------------------------------------------------------
# Hot path: pad/cast x only if needed + tiled pallas_call.
# --------------------------------------------------------------------------
def qlinear_apply(x, prepared, *, out_dtype=None, tm=None):
    """x: (M, in_features). Returns (M, out_features) in out_dtype (def. x.dtype).

    Prefer out_dtype=jnp.bfloat16 downstream: halves writeback bytes and the
    output double-buffer VMEM (matters most on v7x).
    """
    M, K = x.shape
    assert K == prepared["k"], "in_features mismatch"
    N = prepared["n"]
    tn, tk = prepared["tn"], prepared["tk"]
    compute_dtype = prepared["compute_dtype"]
    wq, scale = prepared["wq"], prepared["scale"]
    Kp, Np = wq.shape
    out_dtype = x.dtype if out_dtype is None else out_dtype

    if tm is None:
        tm = min(prepared["tm_target"], _round_up(M, 8))
    # Keep >= 2 parallel grid blocks when the shape allows, so both
    # TensorCores (v7x megacore) get work instead of idling one.
    if (_round_up(M, tm) // tm) * (Np // tn) < 2 and M >= 16:
        tm = _round_up(-(-M // 2), 8)
    Mp = _round_up(M, tm)

    # Skip the extra HBM pass over x when it is already tile-aligned; fuse the
    # compute-dtype cast into the pad otherwise.
    if Mp == M and Kp == K:
        xp = x if x.dtype == compute_dtype else x.astype(compute_dtype)
    else:
        xp = jnp.zeros((Mp, Kp), compute_dtype).at[:M, :K].set(
            x.astype(compute_dtype))

    grid = (Mp // tm, Np // tn, Kp // tk)
    x_b = jnp.dtype(compute_dtype).itemsize
    w_b = jnp.dtype(wq.dtype).itemsize
    o_b = jnp.dtype(out_dtype).itemsize

    flops = 2 * Mp * Np * Kp
    # x is streamed once per N tile, w once per M tile (K is innermost).
    bytes_accessed = (Mp * Kp * x_b * grid[1]
                      + Kp * Np * w_b * grid[0]
                      + Mp * Np * o_b)
    vmem_limit = _vmem_limit_bytes(tm, tn, tk, x_b, w_b, o_b,
                                   prepared["vmem_cap"])

    out = pl.pallas_call(
        _qlinear_matmul_kernel,
        out_shape=jax.ShapeDtypeStruct((Mp, Np), out_dtype),
        grid_spec=pltpu.PrefetchScalarGridSpec(
            num_scalar_prefetch=0,
            grid=grid,
            in_specs=[
                pl.BlockSpec(memory_space=pltpu.MemorySpace.SMEM),   # scale
                pl.BlockSpec((tm, tk), lambda i, j, k: (i, k)),      # x
                pl.BlockSpec((tk, tn), lambda i, j, k: (k, j)),      # q (K,N)
            ],
            out_specs=pl.BlockSpec((tm, tn), lambda i, j, k: (i, j)),
            scratch_shapes=[pltpu.VMEM((tm, tn), jnp.float32)],
        ),
        compiler_params=pltpu.CompilerParams(
            dimension_semantics=("parallel", "parallel", "arbitrary"),
            vmem_limit_bytes=vmem_limit,
        ),
        cost_estimate=pl.CostEstimate(flops=flops,
                                      bytes_accessed=bytes_accessed,
                                      transcendentals=0),
    )(scale, xp, wq)

    if Mp == M and Np == N:
        return out
    return out[:M, :N]


def qlinear_forward(x, weight, nbits_weight=8, *,
                    compute_dtype=jnp.bfloat16, out_dtype=None):
    """Convenience wrapper (prepare + apply). For repeated forwards, call
    qlinear_prepare once per layer and reuse the result with qlinear_apply."""
    prepared = qlinear_prepare(weight, nbits_weight, compute_dtype=compute_dtype)
    return qlinear_apply(x, prepared, out_dtype=out_dtype)


# --------------------------------------------------------------------------
# Pure-JAX reference mirroring the PyTorch forward (f32 throughout).
# --------------------------------------------------------------------------
def _reference(x, weight, nbits_weight=8):
    nLevel = 2 ** (nbits_weight - 1) - 1
    scale = _grid_search_weight_scale(weight, nbits_weight)
    qw = jnp.clip(jnp.round(weight / scale), -nLevel, nLevel) * scale
    return x @ qw.T   # reference matmuls with raw x (Q_x is unused for out)


if __name__ == "__main__":
    # small shapes: batch=8 (seq), in_features=32 (hidden), out_features=16
    batch, in_features, out_features = 8, 32, 16
    nbits_weight = 8   # activation fake-quant does not affect the output

    key = jax.random.PRNGKey(0)
    kx, kw = jax.random.split(key)
    x = jax.random.normal(kx, (batch, in_features), dtype=jnp.float32)
    bound = 1.0 / (in_features ** 0.5)       # nn.Linear-style uniform init
    weight = jax.random.uniform(kw, (out_features, in_features),
                                minval=-bound, maxval=bound,
                                dtype=jnp.float32)

    ref = _reference(x, weight, nbits_weight=nbits_weight)

    # bf16 MXU path with int8 weight storage (weights are exact integer levels;
    # x loses ~8 mantissa bits -> bf16-appropriate tolerance).
    prepared_bf16 = qlinear_prepare(weight, nbits_weight,
                                    compute_dtype=jnp.bfloat16)
    out = jax.block_until_ready(qlinear_apply(x, prepared_bf16))
    assert out.shape == (batch, out_features)
    assert jnp.allclose(out, ref, atol=5e-2, rtol=5e-2), "bf16 path mismatch"

    # f32 compute path: tight check of the tiled/accumulated kernel structure,
    # the in-kernel int8->f32 upcast and the epilogue scale folding.
    prepared_f32 = qlinear_prepare(weight, nbits_weight,
                                   compute_dtype=jnp.float32)
    out_f32 = jax.block_until_ready(qlinear_apply(x, prepared_f32))
    assert jnp.allclose(out_f32, ref, atol=1e-4, rtol=1e-4), "f32 path mismatch"

    print("KERNEL_OK")
</pallas_src>

<mosaic_0001>
module attributes {stable_mosaic.version = 11 : i64} {
  func.func @_qlinear_matmul_kernel(%arg0: i32, %arg1: i32, %arg2: i32, %arg3: memref<1xf32, #tpu.memory_space<smem>>, %arg4: memref<8x128xbf16, #tpu.memory_space<vmem>>, %arg5: memref<128x128xi8, #tpu.memory_space<vmem>>, %arg6: memref<8x128xf32, #tpu.memory_space<vmem>>, %arg7: memref<8x128xf32, #tpu.memory_space<vmem>>) attributes {dimension_semantics = [#tpu.dimension_semantics<parallel>, #tpu.dimension_semantics<parallel>, #tpu.dimension_semantics<arbitrary>], iteration_bounds = array<i64: 1, 1, 1>, scalar_prefetch = 0 : i64, scratch_operands = 1 : i64, tpu.core_type = #tpu.core_type<tc>, window_params = [{transform_indices = @transform_0, window_bounds = array<i64: 1>}, {transform_indices = @transform_1, window_bounds = array<i64: 8, 128>}, {transform_indices = @transform_2, window_bounds = array<i64: 128, 128>}, {transform_indices = @transform_3, window_bounds = array<i64: 8, 128>}]} {
    %c0 = arith.constant 0 : index
    %c0_0 = arith.constant 0 : index
    %0 = vector.load %arg4[%c0, %c0_0] : memref<8x128xbf16, #tpu.memory_space<vmem>>, vector<8x128xbf16>
    %c0_1 = arith.constant 0 : index
    %c0_2 = arith.constant 0 : index
    %1 = vector.load %arg5[%c0_1, %c0_2] : memref<128x128xi8, #tpu.memory_space<vmem>>, vector<128x128xi8>
    %2 = arith.sitofp %1 : vector<128x128xi8> to vector<128x128xbf16>
    %cst = arith.constant dense<0.000000e+00> : vector<8x128xf32>
    %3 = tpu.matmul %0, %2, %cst {dimension_numbers = #tpu.dot_dimension_numbers<[1], [0], [0], [1], [0, 0, 1, 1], [], []>} : vector<8x128xbf16>, vector<128x128xbf16>, vector<8x128xf32> -> vector<8x128xf32>
    %c0_i32 = arith.constant 0 : i32
    %4 = arith.cmpi eq, %arg2, %c0_i32 : i32
    %5 = arith.extui %4 : i1 to i32
    %c0_i32_3 = arith.constant 0 : i32
    %6 = arith.cmpi ne, %5, %c0_i32_3 : i32
    scf.if %6 {
      %c0_8 = arith.constant 0 : index
      %c0_9 = arith.constant 0 : index
      %13 = vector.load %arg7[%c0_8, %c0_9] : memref<8x128xf32, #tpu.memory_space<vmem>>, vector<8x128xf32>
      tpu.vector_store %arg7[%c0_8, %c0_9], %3 {strides = array<i32>} : memref<8x128xf32, #tpu.memory_space<vmem>>, vector<8x128xf32>,
    } else {
    }
    %c0_i32_4 = arith.constant 0 : i32
    %7 = arith.cmpi sgt, %arg2, %c0_i32_4 : i32
    %8 = arith.extui %7 : i1 to i32
    %c0_i32_5 = arith.constant 0 : i32
    %9 = arith.cmpi ne, %8, %c0_i32_5 : i32
    scf.if %9 {
      %c0_8 = arith.constant 0 : index
      %c0_9 = arith.constant 0 : index
      %13 = vector.load %arg7[%c0_8, %c0_9] : memref<8x128xf32, #tpu.memory_space<vmem>>, vector<8x128xf32>
      %14 = arith.addf %13, %3 : vector<8x128xf32>
      %c0_10 = arith.constant 0 : index
      %c0_11 = arith.constant 0 : index
      %15 = vector.load %arg7[%c0_10, %c0_11] : memref<8x128xf32, #tpu.memory_space<vmem>>, vector<8x128xf32>
      tpu.vector_store %arg7[%c0_10, %c0_11], %14 {strides = array<i32>} : memref<8x128xf32, #tpu.memory_space<vmem>>, vector<8x128xf32>,
    } else {
    }
    %c0_i32_6 = arith.constant 0 : i32
    %10 = arith.cmpi eq, %arg2, %c0_i32_6 : i32
    %11 = arith.extui %10 : i1 to i32
    %c0_i32_7 = arith.constant 0 : i32
    %12 = arith.cmpi ne, %11, %c0_i32_7 : i32
    scf.if %12 {
      %c0_8 = arith.constant 0 : index
      %c0_9 = arith.constant 0 : index
      %13 = vector.load %arg7[%c0_8, %c0_9] : memref<8x128xf32, #tpu.memory_space<vmem>>, vector<8x128xf32>
      %c0_10 = arith.constant 0 : index
      %14 = memref.load %arg3[%c0_10] : memref<1xf32, #tpu.memory_space<smem>>
      %15 = vector.broadcast %14 : f32 to vector<8x128xf32>
      %16 = arith.mulf %13, %15 : vector<8x128xf32>
      %c0_11 = arith.constant 0 : index
      %c0_12 = arith.constant 0 : index
      %17 = vector.load %arg6[%c0_11, %c0_12] : memref<8x128xf32, #tpu.memory_space<vmem>>, vector<8x128xf32>
      tpu.vector_store %arg6[%c0_11, %c0_12], %16 {strides = array<i32>} : memref<8x128xf32, #tpu.memory_space<vmem>>, vector<8x128xf32>,
    } else {
    }
    return
  }
  func.func @transform_0(%arg0: i32, %arg1: i32, %arg2: i32) -> i32 {
    %c0_i32 = arith.constant 0 : i32
    %c0_i32_0 = arith.constant 0 : i32
    return %c0_i32 : i32
  }
  func.func @transform_1(%arg0: i32, %arg1: i32, %arg2: i32) -> (i32, i32) {
    %c0_i32 = arith.constant 0 : i32
    return %arg0, %arg2 : i32, i32
  }
  func.func @transform_2(%arg0: i32, %arg1: i32, %arg2: i32) -> (i32, i32) {
    %c0_i32 = arith.constant 0 : i32
    return %arg2, %arg1 : i32, i32
  }
  func.func @transform_3(%arg0: i32, %arg1: i32, %arg2: i32) -> (i32, i32) {
    %c0_i32 = arith.constant 0 : i32
    return %arg0, %arg1 : i32, i32
  }
}

</mosaic_0001>

<llo_original>
// kernel: tpu_custom_call.1
$region0: #{tpu_custom_call.1}
  #allocation0 [shape = 'u32[]', space=smem, size = 0x4, offset = 0x4, fixed_abs, tag = 'smem constant byte address 0x4 - core index']
  #allocation1 [shape = 'u32[72,128]{1,0:T(1,128)}', space=vmem, size = 0x9000, scoped, tag = 'internal scratch']
  #allocation2 [shape = 'f32[8,128]{1,0:T(8,128)}', space=vmem, size = 0x1000, scoped, tag = 'scratch operand']
  #allocation3 [shape = 'f32[1]{0:T(128)S(6)}', space=smem, size = 0x200, scoped, tag = 'scoped memory for tpu_custom_call.1']
  %s0 = inlined_call_operand.<no memory space> [shape: f32[1], index: 0, kind: input, shape index: {}]
  %s1 = inlined_call_operand.hbm [shape: bf16[8,128], index: 1, kind: input, shape index: {}]
  %s2 = inlined_call_operand.hbm [shape: s8[128,128], index: 2, kind: input, shape index: {}]
  %s3 = inlined_call_operand.hbm [shape: f32[8,128], index: 3, kind: output, shape index: {}]
  %s4 = sld [smem:[#allocation0]]
  $region42: #{tpu_custom_call.1} parent=0
    _
  %s6 = ssub.s32 1, %s4
  %s7 = scalar_select 0, %s6, %s4
  %8 = sst [smem:[#allocation3]] %s0
  $region1: #{tpu_custom_call.1} parent=0
    #allocation4 [shape = 'u8[2048]{0}', space=vmem, size = 0x800, scoped, tag = 'input window, operand 1, single buffered']
    #allocation5 [shape = 's32[1]{0}', space=sflag, size = 0x4, scoped, tag = 'scoped memory for tpu_custom_call.1']
    #allocation6 [shape = 's32[1]{0}', space=sflag, size = 0x4, scoped, tag = 'scoped memory for tpu_custom_call.1']
    #allocation7 [shape = 'u8[16384]{0}', space=vmem, size = 0x4000, scoped, tag = 'input window, operand 2, single buffered']
    #allocation8 [shape = 's32[1]{0}', space=sflag, size = 0x4, scoped, tag = 'scoped memory for tpu_custom_call.1']
    #allocation9 [shape = 'u8[4096]{0}', space=vmem, size = 0x1000, scoped, tag = 'output window, operand 0, single buffered']
    %9 = vsyncpa [#allocation5], 0
    %10 = vsyncpa [#allocation8], 0
    %11 = vsyncpa [#allocation6], 0
    // Predicated region
    $region2: #{tpu_custom_call.1} parent=1 // pred_check
      _
    $region3: #{tpu_custom_call.1} parent=1 // pred_check_branch
      %13 = sbr.rel (0) target = $region5
    $region4: #{tpu_custom_call.1} parent=1 // pred_region
      _
    $region5: #{tpu_custom_call.1} parent=1 // pred_fallthru
      _
    // Predicated region
    $region6: #{tpu_custom_call.1} parent=1 // pred_check
      _
    $region7: #{tpu_custom_call.1} parent=1 // pred_check_branch
      %15 = sbr.rel (0) target = $region9
    $region8: #{tpu_custom_call.1} parent=1 // pred_region
      %17 = vsyncadd [#allocation5], 0
      %s19 = sshll.u32 %s1, 4
      %s20 = int_to_ptr.hbm [resolvable:$true] %s19
      %s21 = sshll.u32 [#allocation4], 4
      %s22 = int_to_ptr.vmem [resolvable:$true] %s21
      %24 = dma.hbm_to_vmem [thread:$0]  %s20, 64, %s22, [#allocation5]
    $region9: #{tpu_custom_call.1} parent=1 // pred_fallthru
      _
    // Predicated region
    $region10: #{tpu_custom_call.1} parent=1 // pred_check
      _
    $region11: #{tpu_custom_call.1} parent=1 // pred_check_branch
      %26 = sbr.rel (0) target = $region13
    $region12: #{tpu_custom_call.1} parent=1 // pred_region
      %28 = vsyncadd [#allocation8], 0
      %s29 = sshll.u32 %s2, 4
      %s30 = int_to_ptr.hbm [resolvable:$true] %s29
      %s31 = sshll.u32 [#allocation7], 4
      %s32 = int_to_ptr.vmem [resolvable:$true] %s31
      %37 = dma.hbm_to_vmem [thread:$0]  %s30, 512, %s32, [#allocation8], 128, 128, 8
    $region13: #{tpu_custom_call.1} parent=1 // pred_fallthru
      _
    // Predicated region
    $region14: #{tpu_custom_call.1} parent=1 // pred_check
      _
    $region15: #{tpu_custom_call.1} parent=1 // pred_check_branch
      %39 = sbr.rel (0) target = $region17
    $region16: #{tpu_custom_call.1} parent=1 // pred_region
      %41 = dma.done [#allocation5], 64
    $region17: #{tpu_custom_call.1} parent=1 // pred_fallthru
      _
    // Predicated region
    $region18: #{tpu_custom_call.1} parent=1 // pred_check
      _
    $region19: #{tpu_custom_call.1} parent=1 // pred_check_branch
      %43 = sbr.rel (0) target = $region21
    $region20: #{tpu_custom_call.1} parent=1 // pred_region
      %45 = dma.done [#allocation8], 512
    $region21: #{tpu_custom_call.1} parent=1 // pred_fallthru
      _
    %v46 = vld [vmem:[#allocation4] sm:$0xf]
    %v47 = vld [vmem:[#allocation7] sm:$0xff]
    %v48 = vld [vmem:[#allocation7 + $0x8] sm:$0xff]
    %v49 = vld [vmem:[#allocation7 + $0x10] sm:$0xff]
    %v50 = vld [vmem:[#allocation7 + $0x18] sm:$0xff]
    %v51 = vunpack.c.0.s8 %v47
    %v52 = vunpack.c.1.s8 %v47
    %v53 = vunpack.c.2.s8 %v47
    %v54 = vunpack.c.3.s8 %v47
    %v55 = vunpack.c.0.s8 %v48
    %v56 = vunpack.c.1.s8 %v48
    %v57 = vunpack.c.2.s8 %v48
    %v58 = vunpack.c.3.s8 %v48
    %v59 = vunpack.c.0.s8 %v49
    %v60 = vunpack.c.1.s8 %v49
    %v61 = vunpack.c.2.s8 %v49
    %v62 = vunpack.c.3.s8 %v49
    %v63 = vunpack.c.0.s8 %v50
    %v64 = vunpack.c.1.s8 %v50
    %v65 = vunpack.c.2.s8 %v50
    %v66 = vunpack.c.3.s8 %v50
    %v67 = vcvt.s32.f32 %v51
    %v68 = vcvt.s32.f32 %v52
    %v69 = vcvt.s32.f32 %v53
    %v70 = vcvt.s32.f32 %v54
    %v71 = vcvt.s32.f32 %v55
    %v72 = vcvt.s32.f32 %v56
    %v73 = vcvt.s32.f32 %v57
    %v74 = vcvt.s32.f32 %v58
    %v75 = vcvt.s32.f32 %v59
    %v76 = vcvt.s32.f32 %v60
    %v77 = vcvt.s32.f32 %v61
    %v78 = vcvt.s32.f32 %v62
    %v79 = vcvt.s32.f32 %v63
    %v80 = vcvt.s32.f32 %v64
    %v81 = vcvt.s32.f32 %v65
    %v82 = vcvt.s32.f32 %v66
    %v83 = vpack.c.bf16 %v68, %v67
    %v84 = vpack.c.bf16 %v70, %v69
    %v85 = vpack.c.bf16 %v72, %v71
    %v86 = vpack.c.bf16 %v74, %v73
    %v87 = vpack.c.bf16 %v76, %v75
    %v88 = vpack.c.bf16 %v78, %v77
    %v89 = vpack.c.bf16 %v80, %v79
    %v90 = vpack.c.bf16 %v82, %v81
    %91 = vmatpush.bf16.msra.mxu0 %v90
    %92 = vmatpush.bf16.msra.mxu0 %v89
    %93 = vmatpush.bf16.msra.mxu0 %v88
    %94 = vmatpush.bf16.msra.mxu0 %v87
    %95 = vmatpush.bf16.msra.mxu0 %v86
    %96 = vmatpush.bf16.msra.mxu0 %v85
    %97 = vmatpush.bf16.msra.mxu0 %v84
    %98 = vmatpush.bf16.msra.mxu0 %v83
    %99 = vmatmul.bf16.gmra.mxu0 %v46
    %v100 = vpop.f32.mrf.mxu0
    %v101 = vadd.f32 0.0, %v100
    %v102 = vpop.f32.mrf.mxu0
    %103 = vdwg.mxu0
    %p104 = scmp.eq.s32.totalorder 0, 0
    // Predicated region
    $region22: #{tpu_custom_call.1} parent=1 // pred_check
      %p105 = pneg %p104
    $region23: #{tpu_custom_call.1} parent=1 // pred_check_branch
      %107 = sbr.rel (%p105) target = $region25
    $region24: #{tpu_custom_call.1} parent=1 // pred_region
      %108 = vst [vmem:[#allocation2] sm:$0xff] %v101
    $region25: #{tpu_custom_call.1} parent=1 // pred_fallthru
      _
    %p109 = scmp.gt.s32.totalorder 0, 0
    // Predicated region
    $region26: #{tpu_custom_call.1} parent=1 // pred_check
      %p110 = pneg %p109
    $region27: #{tpu_custom_call.1} parent=1 // pred_check_branch
      %112 = sbr.rel (%p110) target = $region29
    $region28: #{tpu_custom_call.1} parent=1 // pred_region
      %v113 = vld [vmem:[#allocation2] sm:$0xff]
      %v114 = vadd.f32 %v113, %v101
      %115 = vst [vmem:[#allocation2] sm:$0xff] %v114
    $region29: #{tpu_custom_call.1} parent=1 // pred_fallthru
      _
    // Predicated region
    $region30: #{tpu_custom_call.1} parent=1 // pred_check
      %p116 = pneg %p104
    $region31: #{tpu_custom_call.1} parent=1 // pred_check_branch
      %118 = sbr.rel (%p116) target = $region33
    $region32: #{tpu_custom_call.1} parent=1 // pred_region
      %v119 = vld [vmem:[#allocation2] sm:$0xff]
      %s120 = sld [smem:[#allocation3]]
      %v121 = vstv %s120
      %v122 = vmul.f32 %v119, %v121
      %123 = vst [vmem:[#allocation9] sm:$0xff] %v122
    $region33: #{tpu_custom_call.1} parent=1 // pred_fallthru
      _
    // Predicated region
    $region34: #{tpu_custom_call.1} parent=1 // pred_check
      _
    $region35: #{tpu_custom_call.1} parent=1 // pred_check_branch
      %125 = sbr.rel (0) target = $region37
    $region36: #{tpu_custom_call.1} parent=1 // pred_region
      %127 = vsyncadd [#allocation6], 0
      %s129 = sshll.u32 [#allocation9], 4
      %s130 = int_to_ptr.vmem [resolvable:$true] %s129
      %s131 = sshll.u32 %s3, 4
      %s132 = int_to_ptr.hbm [resolvable:$true] %s131
      %134 = dma.vmem_to_hbm [thread:$0]  %s130, 128, %s132, [#allocation6]
    $region37: #{tpu_custom_call.1} parent=1 // pred_fallthru
      _
    // Predicated region
    $region38: #{tpu_custom_call.1} parent=1 // pred_check
      _
    $region39: #{tpu_custom_call.1} parent=1 // pred_check_branch
      %136 = sbr.rel (0) target = $region41
    $region40: #{tpu_custom_call.1} parent=1 // pred_region
      %138 = dma.done [#allocation6], 128
    $region41: #{tpu_custom_call.1} parent=1 // pred_fallthru
      _
    %139 = vsyncpa [#allocation5], 1
    %140 = vsyncpa [#allocation8], 1
    %141 = vsyncpa [#allocation6], 1

</llo_original>
